<compile_context>
chip_gen: v7x
topology: tpu7x:2x2x1
jax: 0.10.0
libtpu: 0.0.40
codegen_flags: <defaults>
</compile_context>

<pallas_src>
import jax
import jax.numpy as jnp
from jax.experimental import pallas as pl
from jax.experimental.pallas import tpu as pltpu


def _round_up(x, m):
    return ((x + m - 1) // m) * m


def _make_mil_kernel(n_valid, n_padded):
    """n_valid: real instances per bag; n_padded: instance axis after padding."""
    needs_mask = (n_valid != n_padded)
    NEG = -1e30  # f32-safe "-inf" for the instance mask and running-max init

    def mil_kernel(x_ref, w1_ref, w2_ref, wfc_ref, bfc_ref, out_ref,
                   m_sc, d_sc, p_sc):
        # x_ref:   (TB, TN, C)  bf16  one instance-chunk of a tile of TB bags
        # w1_ref:  (C, Hp)      bf16  attention hidden projection (Hp = 128-pad)
        # w2_ref:  (1, Hp)      f32   attention score projection (stored as row)
        # wfc_ref: (C, NCp)     bf16  classifier weight (NCp = 128-pad)
        # bfc_ref: (1, NCp)     f32   classifier bias
        # out_ref: (TB, NCp)    f32   resident across the instance-chunk axis
        # scratch: m_sc,d_sc (TB,1) f32; p_sc (TB,C) f32 (online-softmax state)
        TB, TN, C = x_ref.shape
        n_idx = pl.program_id(1)

        @pl.when(n_idx == 0)
        def _():
            m_sc[...] = jnp.full_like(m_sc, NEG)
            d_sc[...] = jnp.zeros_like(d_sc)
            p_sc[...] = jnp.zeros_like(p_sc)

        x_bf = x_ref[...]                                    # (TB, TN, C) bf16

        # ---- attention MLP scores (bf16 MXU matmul, f32 accumulate) ---------
        h = jnp.tanh(jnp.dot(x_bf.reshape(TB * TN, C), w1_ref[...],
                             preferred_element_type=jnp.float32))  # (TB*TN, Hp)
        # Width-1 second projection on the VPU/XLU (mul + lane reduce) instead
        # of a degenerate 1-output-lane MXU matmul.
        s = jnp.sum(h * w2_ref[...], axis=-1, keepdims=True)        # (TB*TN, 1)
        s = s.reshape(TB, TN, 1)                                     # f32

        if needs_mask:
            idx = n_idx * TN + jax.lax.broadcasted_iota(
                jnp.int32, (TB, TN, 1), 1)
            s = jnp.where(idx < n_valid, s, NEG)

        # ---- online softmax + unnormalized pooled accumulation (f32) --------
        m_prev = m_sc[...]                                           # (TB, 1)
        m_chunk = jnp.max(s, axis=1, keepdims=True).reshape(TB, 1)
        m_new = jnp.maximum(m_prev, m_chunk)                         # (TB, 1)
        alpha = jnp.exp(m_prev - m_new)                              # (TB, 1)
        e = jnp.exp(s - m_new.reshape(TB, 1, 1))                     # (TB, TN, 1)

        x_f32 = x_bf.astype(jnp.float32)
        d_sc[...] = alpha * d_sc[...] + \
            jnp.sum(e, axis=1, keepdims=True).reshape(TB, 1)
        p_sc[...] = alpha * p_sc[...] + jnp.sum(e * x_f32, axis=1)   # (TB, C)
        m_sc[...] = m_new

        # ---- finalize: normalize, classify (bf16 MXU, f32 acc), store -------
        @pl.when(n_idx == pl.num_programs(1) - 1)
        def _():
            pooled = p_sc[...] * pl.reciprocal(d_sc[...], approx=False)
            logits = jnp.dot(pooled.astype(jnp.bfloat16), wfc_ref[...],
                             preferred_element_type=jnp.float32)     # (TB, NCp)
            out_ref[...] = (logits + bfc_ref[...]).astype(out_ref.dtype)

    return mil_kernel


def mil_forward(x, w1, w2, wfc, bfc, *,
                bag_tile=128,
                instance_chunk=256,
                vmem_budget_bytes=24 * 1024 * 1024):
    """x: (B, N, C) float32. Returns (B, num_classes) float32.

    Weights are given pre-transposed to (in, out):
      w1 (C, H), w2 (H, 1), wfc (C, NC), bfc (NC,).
    NOTE: the kernel is retraced if N (instances per bag) changes across calls.
    """
    B, N, C = x.shape
    H = w1.shape[1]
    NC = wfc.shape[1]
    assert w1.shape == (C, H)
    assert w2.shape == (H, 1)
    assert wfc.shape == (C, NC)

    # ---- TPU-friendly padded sizes ------------------------------------------
    Hp = _round_up(max(H, 1), 128)         # lane-dense hidden width for the MXU
    NCp = _round_up(max(NC, 1), 128)       # lane-dense (unmasked vst) output

    # Instance-axis chunk (second grid axis, "arbitrary" / reduction).
    Np8 = _round_up(N, 8)
    TN = min(_round_up(instance_chunk, 8), Np8)
    Np = _round_up(Np8, TN)

    # VMEM-budgeted bag tile: per-bag bytes per step =
    #   x chunk double-buffered (bf16) + f32 upcast + e*x temp
    #   + f32 hidden tensor + pooled scratch + double-buffered output.
    per_bag = (TN * C * (2 * 2 + 4 + 4)      # x dbuf (bf16) + x_f32 + e*x temp
               + TN * Hp * 4                 # h (f32)
               + C * 4                       # p_sc scratch
               + NCp * 4 * 2)                # out dbuf
    tb_budget = max(8, (vmem_budget_bytes // max(per_bag, 1)) // 8 * 8)

    Bp0 = _round_up(B, 8)
    TB = min(bag_tile, Bp0, tb_budget)
    # Keep >= 2 bag-tile steps when possible so the "parallel" axis can split
    # across v7x's two TensorCores (no effect on single-TC v5e/v6e).
    if Bp0 >= 16:
        TB = min(TB, max(8, (Bp0 // 2) // 8 * 8))
    TB = max(8, TB)
    Bp = _round_up(B, TB)

    # ---- pad + cast operands --------------------------------------------------
    x_p = x
    if (Bp, Np) != (B, N):
        x_p = jnp.pad(x, ((0, Bp - B), (0, Np - N), (0, 0)))
    x_bf = x_p.astype(jnp.bfloat16)                       # halve HBM DMA bytes
    w1_bf = jnp.pad(w1, ((0, 0), (0, Hp - H))).astype(jnp.bfloat16)
    w2_row = jnp.pad(w2.reshape(1, H), ((0, 0), (0, Hp - H))).astype(jnp.float32)
    wfc_bf = jnp.pad(wfc, ((0, 0), (0, NCp - NC))).astype(jnp.bfloat16)
    bfc_p = jnp.pad(bfc.reshape(1, NC), ((0, 0), (0, NCp - NC))).astype(jnp.float32)

    out = pl.pallas_call(
        _make_mil_kernel(N, Np),
        out_shape=jax.ShapeDtypeStruct((Bp, NCp), jnp.float32),
        grid_spec=pltpu.PrefetchScalarGridSpec(
            num_scalar_prefetch=0,
            grid=(Bp // TB, Np // TN),
            in_specs=[
                pl.BlockSpec((TB, TN, C), lambda t, n: (t, n, 0)),  # x chunk
                pl.BlockSpec((C, Hp), lambda t, n: (0, 0)),
                pl.BlockSpec((1, Hp), lambda t, n: (0, 0)),
                pl.BlockSpec((C, NCp), lambda t, n: (0, 0)),
                pl.BlockSpec((1, NCp), lambda t, n: (0, 0)),
            ],
            # Same output block across the instance-chunk axis -> resident
            # accumulator; written only on the last chunk.
            out_specs=pl.BlockSpec((TB, NCp), lambda t, n: (t, 0)),
            scratch_shapes=[
                pltpu.VMEM((TB, 1), jnp.float32),   # running max
                pltpu.VMEM((TB, 1), jnp.float32),   # running softmax denom
                pltpu.VMEM((TB, C), jnp.float32),   # unnormalized pooled sum
            ],
        ),
        compiler_params=pltpu.CompilerParams(
            dimension_semantics=("parallel", "arbitrary"),
            vmem_limit_bytes=32 * 1024 * 1024,
        ),
    )(x_bf, w1_bf, w2_row, wfc_bf, bfc_p)

    return out[:B, :NC]


def mil_reference_f32(x, w1, w2, wfc, bfc):
    """Pure-f32 JAX reference matching the PyTorch forward (att_type='normal')."""
    h = jnp.tanh(jnp.einsum("bnc,ch->bnh", x, w1))
    s = jnp.einsum("bnh,ho->bno", h, w2)            # (B, N, 1)
    att = jax.nn.softmax(s, axis=1)                 # softmax over instances
    pooled = jnp.einsum("bno,bnc->bc", att, x)      # (B, C)
    return pooled @ wfc + bfc


def mil_reference_bf16_inputs(x, w1, w2, wfc, bfc):
    """Reference mimicking the kernel's bf16 MXU inputs (f32 math elsewhere)."""
    f32 = jnp.float32
    xb = x.astype(jnp.bfloat16).astype(f32)
    w1b = w1.astype(jnp.bfloat16).astype(f32)
    wfcb = wfc.astype(jnp.bfloat16).astype(f32)
    h = jnp.tanh(jnp.einsum("bnc,ch->bnh", xb, w1b))
    s = jnp.einsum("bnh,ho->bno", h, w2)
    att = jax.nn.softmax(s, axis=1)
    pooled = jnp.einsum("bno,bnc->bc", att, xb)
    pooled = pooled.astype(jnp.bfloat16).astype(f32)
    return pooled @ wfcb + bfc


if __name__ == "__main__":
    # Small shapes consistent with the module: bag of N instances of dim C.
    B, N, C = 2, 8, 32
    reduction = 16
    H = C // reduction                # = 2
    NUM_CLASSES = 7

    key = jax.random.PRNGKey(0)
    kx, k1, k2, k3, k4 = jax.random.split(key, 5)

    x = jax.random.normal(kx, (B, N, C), dtype=jnp.float32)

    # Deterministic synthetic parameters, stored transposed to (in, out):
    #   torch Linear(C, H, bias=False).weight is (H, C) -> here w1 is (C, H).
    w1 = jax.random.normal(k1, (C, H), dtype=jnp.float32) * 0.2
    w2 = jax.random.normal(k2, (H, 1), dtype=jnp.float32) * 0.2
    wfc = jax.random.normal(k3, (C, NUM_CLASSES), dtype=jnp.float32) * 0.1
    bfc = jax.random.normal(k4, (NUM_CLASSES,), dtype=jnp.float32) * 0.1

    out = mil_forward(x, w1, w2, wfc, bfc)
    out = jax.block_until_ready(out)
    assert out.shape == (B, NUM_CLASSES)

    # Primary check: against a reference fed the same bf16-rounded operands.
    ref_bf = mil_reference_bf16_inputs(x, w1, w2, wfc, bfc)
    assert jnp.allclose(out, ref_bf, atol=2e-3, rtol=2e-3), (out, ref_bf)

    # Sanity check: module semantics vs. the pure-f32 reference (bf16 input
    # rounding only, so a looser tolerance).
    ref_f32 = mil_reference_f32(x, w1, w2, wfc, bfc)
    assert jnp.allclose(out, ref_f32, atol=5e-2, rtol=5e-2), (out, ref_f32)

    print("KERNEL_OK")
</pallas_src>

<mosaic_0001>
module attributes {stable_mosaic.version = 11 : i64} {
  func.func @mil_kernel(%arg0: i32, %arg1: i32, %arg2: memref<8x8x32xbf16, #tpu.memory_space<vmem>>, %arg3: memref<32x128xbf16, #tpu.memory_space<vmem>>, %arg4: memref<1x128xf32, #tpu.memory_space<vmem>>, %arg5: memref<32x128xbf16, #tpu.memory_space<vmem>>, %arg6: memref<1x128xf32, #tpu.memory_space<vmem>>, %arg7: memref<8x128xf32, #tpu.memory_space<vmem>>, %arg8: memref<8x1xf32, #tpu.memory_space<vmem>>, %arg9: memref<8x1xf32, #tpu.memory_space<vmem>>, %arg10: memref<8x32xf32, #tpu.memory_space<vmem>>) attributes {dimension_semantics = [#tpu.dimension_semantics<parallel>, #tpu.dimension_semantics<arbitrary>], iteration_bounds = array<i64: 1, 1>, scalar_prefetch = 0 : i64, scratch_operands = 3 : i64, tpu.core_type = #tpu.core_type<tc>, window_params = [{transform_indices = @transform_0, window_bounds = array<i64: 8, 8, 32>}, {pipeline_mode = #tpu.pipeline_mode<synchronous>, transform_indices = @transform_1, window_bounds = array<i64: 32, 128>}, {pipeline_mode = #tpu.pipeline_mode<synchronous>, transform_indices = @transform_2, window_bounds = array<i64: 1, 128>}, {pipeline_mode = #tpu.pipeline_mode<synchronous>, transform_indices = @transform_3, window_bounds = array<i64: 32, 128>}, {pipeline_mode = #tpu.pipeline_mode<synchronous>, transform_indices = @transform_4, window_bounds = array<i64: 1, 128>}, {transform_indices = @transform_5, window_bounds = array<i64: 8, 128>}]} {
    %c0_i32 = arith.constant 0 : i32
    %0 = arith.cmpi eq, %arg1, %c0_i32 : i32
    %1 = arith.extui %0 : i1 to i32
    %c0_i32_0 = arith.constant 0 : i32
    %2 = arith.cmpi ne, %1, %c0_i32_0 : i32
    scf.if %2 {
      %cst_25 = arith.constant -1.000000e+30 : f32
      %45 = vector.broadcast %cst_25 : f32 to vector<8x1xf32>
      %c0_26 = arith.constant 0 : index
      %c0_27 = arith.constant 0 : index
      %46 = vector.load %arg8[%c0_26, %c0_27] : memref<8x1xf32, #tpu.memory_space<vmem>>, vector<8x1xf32>
      tpu.vector_store %arg8[%c0_26, %c0_27], %45 {strides = array<i32>} : memref<8x1xf32, #tpu.memory_space<vmem>>, vector<8x1xf32>,
      %cst_28 = arith.constant 0.000000e+00 : f32
      %47 = vector.broadcast %cst_28 : f32 to vector<8x1xf32>
      %c0_29 = arith.constant 0 : index
      %c0_30 = arith.constant 0 : index
      %48 = vector.load %arg9[%c0_29, %c0_30] : memref<8x1xf32, #tpu.memory_space<vmem>>, vector<8x1xf32>
      tpu.vector_store %arg9[%c0_29, %c0_30], %47 {strides = array<i32>} : memref<8x1xf32, #tpu.memory_space<vmem>>, vector<8x1xf32>,
      %cst_31 = arith.constant 0.000000e+00 : f32
      %49 = vector.broadcast %cst_31 : f32 to vector<8x32xf32>
      %c0_32 = arith.constant 0 : index
      %c0_33 = arith.constant 0 : index
      %50 = vector.load %arg10[%c0_32, %c0_33] : memref<8x32xf32, #tpu.memory_space<vmem>>, vector<8x32xf32>
      tpu.vector_store %arg10[%c0_32, %c0_33], %49 {strides = array<i32>} : memref<8x32xf32, #tpu.memory_space<vmem>>, vector<8x32xf32>,
    } else {
    }
    %c0 = arith.constant 0 : index
    %c0_1 = arith.constant 0 : index
    %c0_2 = arith.constant 0 : index
    %3 = vector.load %arg2[%c0, %c0_1, %c0_2] : memref<8x8x32xbf16, #tpu.memory_space<vmem>>, vector<8x8x32xbf16>
    %4 = vector.shape_cast %3 : vector<8x8x32xbf16> to vector<64x32xbf16>
    %c0_3 = arith.constant 0 : index
    %c0_4 = arith.constant 0 : index
    %5 = vector.load %arg3[%c0_3, %c0_4] : memref<32x128xbf16, #tpu.memory_space<vmem>>, vector<32x128xbf16>
    %cst = arith.constant dense<0.000000e+00> : vector<64x128xf32>
    %6 = tpu.matmul %4, %5, %cst {dimension_numbers = #tpu.dot_dimension_numbers<[1], [0], [0], [1], [0, 0, 1, 1], [], []>} : vector<64x32xbf16>, vector<32x128xbf16>, vector<64x128xf32> -> vector<64x128xf32>
    %7 = math.tanh %6 : vector<64x128xf32>
    %c0_5 = arith.constant 0 : index
    %c0_6 = arith.constant 0 : index
    %8 = vector.load %arg4[%c0_5, %c0_6] : memref<1x128xf32, #tpu.memory_space<vmem>>, vector<1x128xf32>
    %9 = vector.broadcast %8 : vector<1x128xf32> to vector<64x128xf32>
    %10 = arith.mulf %7, %9 : vector<64x128xf32>
    %cst_7 = arith.constant dense<0.000000e+00> : vector<64xf32>
    %11 = vector.multi_reduction <add>, %10, %cst_7 [1] : vector<64x128xf32> to vector<64xf32>
    %12 = vector.shape_cast %11 : vector<64xf32> to vector<64x1xf32>
    %13 = vector.shape_cast %12 : vector<64x1xf32> to vector<8x8x1xf32>
    %c0_8 = arith.constant 0 : index
    %c0_9 = arith.constant 0 : index
    %14 = vector.load %arg8[%c0_8, %c0_9] : memref<8x1xf32, #tpu.memory_space<vmem>>, vector<8x1xf32>
    %cst_10 = arith.constant dense<0xFF800000> : vector<8x1xf32>
    %15 = vector.multi_reduction <maximumf>, %13, %cst_10 [1] : vector<8x8x1xf32> to vector<8x1xf32>
    %16 = vector.shape_cast %15 : vector<8x1xf32> to vector<8x1x1xf32>
    %17 = vector.shape_cast %16 : vector<8x1x1xf32> to vector<8x1xf32>
    %18 = arith.maximumf %14, %17 : vector<8x1xf32>
    %19 = arith.subf %14, %18 : vector<8x1xf32>
    %20 = math.exp %19 : vector<8x1xf32>
    %21 = vector.shape_cast %18 : vector<8x1xf32> to vector<8x1x1xf32>
    %22 = vector.broadcast %21 : vector<8x1x1xf32> to vector<8x8x1xf32>
    %23 = arith.subf %13, %22 : vector<8x8x1xf32>
    %24 = math.exp %23 : vector<8x8x1xf32>
    %25 = arith.extf %3 : vector<8x8x32xbf16> to vector<8x8x32xf32>
    %c0_11 = arith.constant 0 : index
    %c0_12 = arith.constant 0 : index
    %26 = vector.load %arg9[%c0_11, %c0_12] : memref<8x1xf32, #tpu.memory_space<vmem>>, vector<8x1xf32>
    %27 = arith.mulf %20, %26 : vector<8x1xf32>
    %cst_13 = arith.constant dense<0.000000e+00> : vector<8x1xf32>
    %28 = vector.multi_reduction <add>, %24, %cst_13 [1] : vector<8x8x1xf32> to vector<8x1xf32>
    %29 = vector.shape_cast %28 : vector<8x1xf32> to vector<8x1x1xf32>
    %30 = vector.shape_cast %29 : vector<8x1x1xf32> to vector<8x1xf32>
    %31 = arith.addf %27, %30 : vector<8x1xf32>
    %c0_14 = arith.constant 0 : index
    %c0_15 = arith.constant 0 : index
    %32 = vector.load %arg9[%c0_14, %c0_15] : memref<8x1xf32, #tpu.memory_space<vmem>>, vector<8x1xf32>
    tpu.vector_store %arg9[%c0_14, %c0_15], %31 {strides = array<i32>} : memref<8x1xf32, #tpu.memory_space<vmem>>, vector<8x1xf32>,
    %c0_16 = arith.constant 0 : index
    %c0_17 = arith.constant 0 : index
    %33 = vector.load %arg10[%c0_16, %c0_17] : memref<8x32xf32, #tpu.memory_space<vmem>>, vector<8x32xf32>
    %34 = vector.broadcast %20 : vector<8x1xf32> to vector<8x32xf32>
    %35 = arith.mulf %34, %33 : vector<8x32xf32>
    %36 = vector.broadcast %24 : vector<8x8x1xf32> to vector<8x8x32xf32>
    %37 = arith.mulf %36, %25 : vector<8x8x32xf32>
    %cst_18 = arith.constant dense<0.000000e+00> : vector<8x32xf32>
    %38 = vector.multi_reduction <add>, %37, %cst_18 [1] : vector<8x8x32xf32> to vector<8x32xf32>
    %39 = arith.addf %35, %38 : vector<8x32xf32>
    %c0_19 = arith.constant 0 : index
    %c0_20 = arith.constant 0 : index
    %40 = vector.load %arg10[%c0_19, %c0_20] : memref<8x32xf32, #tpu.memory_space<vmem>>, vector<8x32xf32>
    tpu.vector_store %arg10[%c0_19, %c0_20], %39 {strides = array<i32>} : memref<8x32xf32, #tpu.memory_space<vmem>>, vector<8x32xf32>,
    %c0_21 = arith.constant 0 : index
    %c0_22 = arith.constant 0 : index
    %41 = vector.load %arg8[%c0_21, %c0_22] : memref<8x1xf32, #tpu.memory_space<vmem>>, vector<8x1xf32>
    tpu.vector_store %arg8[%c0_21, %c0_22], %18 {strides = array<i32>} : memref<8x1xf32, #tpu.memory_space<vmem>>, vector<8x1xf32>,
    %c0_i32_23 = arith.constant 0 : i32
    %42 = arith.cmpi eq, %arg1, %c0_i32_23 : i32
    %43 = arith.extui %42 : i1 to i32
    %c0_i32_24 = arith.constant 0 : i32
    %44 = arith.cmpi ne, %43, %c0_i32_24 : i32
    scf.if %44 {
      %c0_25 = arith.constant 0 : index
      %c0_26 = arith.constant 0 : index
      %45 = vector.load %arg10[%c0_25, %c0_26] : memref<8x32xf32, #tpu.memory_space<vmem>>, vector<8x32xf32>
      %c0_27 = arith.constant 0 : index
      %c0_28 = arith.constant 0 : index
      %46 = vector.load %arg9[%c0_27, %c0_28] : memref<8x1xf32, #tpu.memory_space<vmem>>, vector<8x1xf32>
      %47 = tpu.reciprocal %46 : vector<8x1xf32> -> vector<8x1xf32>
      %48 = vector.broadcast %47 : vector<8x1xf32> to vector<8x32xf32>
      %49 = arith.mulf %45, %48 : vector<8x32xf32>
      %50 = arith.truncf %49 : vector<8x32xf32> to vector<8x32xbf16>
      %c0_29 = arith.constant 0 : index
      %c0_30 = arith.constant 0 : index
      %51 = vector.load %arg5[%c0_29, %c0_30] : memref<32x128xbf16, #tpu.memory_space<vmem>>, vector<32x128xbf16>
      %cst_31 = arith.constant dense<0.000000e+00> : vector<8x128xf32>
      %52 = tpu.matmul %50, %51, %cst_31 {dimension_numbers = #tpu.dot_dimension_numbers<[1], [0], [0], [1], [0, 0, 1, 1], [], []>} : vector<8x32xbf16>, vector<32x128xbf16>, vector<8x128xf32> -> vector<8x128xf32>
      %c0_32 = arith.constant 0 : index
      %c0_33 = arith.constant 0 : index
      %53 = vector.load %arg6[%c0_32, %c0_33] : memref<1x128xf32, #tpu.memory_space<vmem>>, vector<1x128xf32>
      %54 = vector.broadcast %53 : vector<1x128xf32> to vector<8x128xf32>
      %55 = arith.addf %52, %54 : vector<8x128xf32>
      %c0_34 = arith.constant 0 : index
      %c0_35 = arith.constant 0 : index
      %56 = vector.load %arg7[%c0_34, %c0_35] : memref<8x128xf32, #tpu.memory_space<vmem>>, vector<8x128xf32>
      tpu.vector_store %arg7[%c0_34, %c0_35], %55 {strides = array<i32>} : memref<8x128xf32, #tpu.memory_space<vmem>>, vector<8x128xf32>,
    } else {
    }
    return
  }
  func.func @transform_0(%arg0: i32, %arg1: i32) -> (i32, i32, i32) {
    %c0_i32 = arith.constant 0 : i32
    %c0_i32_0 = arith.constant 0 : i32
    return %arg0, %arg1, %c0_i32 : i32, i32, i32
  }
  func.func @transform_1(%arg0: i32, %arg1: i32) -> (i32, i32) {
    %c0_i32 = arith.constant 0 : i32
    %c0_i32_0 = arith.constant 0 : i32
    %c0_i32_1 = arith.constant 0 : i32
    return %c0_i32, %c0_i32_0 : i32, i32
  }
  func.func @transform_2(%arg0: i32, %arg1: i32) -> (i32, i32) {
    %c0_i32 = arith.constant 0 : i32
    %c0_i32_0 = arith.constant 0 : i32
    %c0_i32_1 = arith.constant 0 : i32
    return %c0_i32, %c0_i32_0 : i32, i32
  }
  func.func @transform_3(%arg0: i32, %arg1: i32) -> (i32, i32) {
    %c0_i32 = arith.constant 0 : i32
    %c0_i32_0 = arith.constant 0 : i32
    %c0_i32_1 = arith.constant 0 : i32
    return %c0_i32, %c0_i32_0 : i32, i32
  }
  func.func @transform_4(%arg0: i32, %arg1: i32) -> (i32, i32) {
    %c0_i32 = arith.constant 0 : i32
    %c0_i32_0 = arith.constant 0 : i32
    %c0_i32_1 = arith.constant 0 : i32
    return %c0_i32, %c0_i32_0 : i32, i32
  }
  func.func @transform_5(%arg0: i32, %arg1: i32) -> (i32, i32) {
    %c0_i32 = arith.constant 0 : i32
    %c0_i32_0 = arith.constant 0 : i32
    return %arg0, %c0_i32 : i32, i32
  }
}

</mosaic_0001>

<llo_original>
// kernel: tpu_custom_call.1
$region0: #{tpu_custom_call.1}
  #allocation0 [shape = 'u32[]', space=smem, size = 0x4, offset = 0x4, fixed_abs, tag = 'smem constant byte address 0x4 - core index']
  #allocation1 [shape = 'u32[144,128]{1,0:T(1,128)}', space=vmem, size = 0x12000, scoped, tag = 'internal scratch']
  #allocation2 [shape = 'f32[8,1]{1,0:T(8,128)}', space=vmem, size = 0x1000, scoped, tag = 'scratch operand']
  #allocation3 [shape = 'f32[8,1]{1,0:T(8,128)}', space=vmem, size = 0x1000, scoped, tag = 'scratch operand']
  #allocation4 [shape = 'f32[8,32]{1,0:T(8,128)}', space=vmem, size = 0x1000, scoped, tag = 'scratch operand']
  %s0 = inlined_call_operand.hbm [shape: bf16[8,8,32], index: 0, kind: input, shape index: {}]
  %s1 = inlined_call_operand.hbm [shape: bf16[32,128], index: 1, kind: input, shape index: {}]
  %s2 = inlined_call_operand.vmem [shape: f32[1,128], index: 2, kind: input, shape index: {}]
  %s3 = inlined_call_operand.hbm [shape: bf16[32,128], index: 3, kind: input, shape index: {}]
  %s4 = inlined_call_operand.vmem [shape: f32[1,128], index: 4, kind: input, shape index: {}]
  %s5 = inlined_call_operand.hbm [shape: f32[8,128], index: 5, kind: output, shape index: {}]
  %s6 = sld [smem:[#allocation0]]
  $region50: #{tpu_custom_call.1} parent=0
    _
  %s8 = ssub.s32 1, %s6
  %s9 = scalar_select 0, %s8, %s6
  $region1: #{tpu_custom_call.1} parent=0
    #allocation5 [shape = 'u8[16384]{0}', space=vmem, size = 0x4000, scoped, tag = 'input window, operand 0, single buffered']
    #allocation6 [shape = 's32[1]{0}', space=sflag, size = 0x4, scoped, tag = 'scoped memory for tpu_custom_call.1']
    #allocation7 [shape = 's32[1]{0}', space=sflag, size = 0x4, scoped, tag = 'scoped memory for tpu_custom_call.1']
    #allocation8 [shape = 'u8[8192]{0}', space=vmem, size = 0x2000, scoped, tag = 'input window, operand 1, single buffered']
    #allocation9 [shape = 's32[1]{0}', space=sflag, size = 0x4, scoped, tag = 'scoped memory for tpu_custom_call.1']
    #allocation10 [shape = 'u8[8192]{0}', space=vmem, size = 0x2000, scoped, tag = 'input window, operand 3, single buffered']
    #allocation11 [shape = 'u8[4096]{0}', space=vmem, size = 0x1000, scoped, tag = 'output window, operand 0, single buffered']
    %10 = vsyncpa [#allocation6], 0
    %11 = vsyncpa [#allocation9], 0
    %12 = vsyncpa [#allocation7], 0
    // Predicated region
    $region2: #{tpu_custom_call.1} parent=1 // pred_check
      _
    $region3: #{tpu_custom_call.1} parent=1 // pred_check_branch
      %14 = sbr.rel (0) target = $region5
    $region4: #{tpu_custom_call.1} parent=1 // pred_region
      %s16 = ssub.s32 512, 512
      %17 = vsyncadd [#allocation6], %s16
      %s18 = sshll.u32 [#allocation5], 4
      %s19 = int_to_ptr.vmem [resolvable:$true] %s18
      %24 = dma.hbm_to_vmem [thread:$0]  %s0, 512, %s19, [#allocation6], 64, 64, 4
    $region5: #{tpu_custom_call.1} parent=1 // pred_fallthru
      _
    // Predicated region
    $region6: #{tpu_custom_call.1} parent=1 // pred_check
      _
    $region7: #{tpu_custom_call.1} parent=1 // pred_check_branch
      %26 = sbr.rel (0) target = $region9
    $region8: #{tpu_custom_call.1} parent=1 // pred_region
      %s28 = ssub.s32 256, 256
      %29 = vsyncadd [#allocation9], %s28
      %s30 = sshll.u32 [#allocation8], 4
      %s31 = int_to_ptr.vmem [resolvable:$true] %s30
      %36 = dma.hbm_to_vmem [thread:$0]  %s1, 256, %s31, [#allocation9], 64, 64, 4
    $region9: #{tpu_custom_call.1} parent=1 // pred_fallthru
      _
    // Predicated region
    $region10: #{tpu_custom_call.1} parent=1 // pred_check
      _
    $region11: #{tpu_custom_call.1} parent=1 // pred_check_branch
      %38 = sbr.rel (0) target = $region13
    $region12: #{tpu_custom_call.1} parent=1 // pred_region
      _
    $region13: #{tpu_custom_call.1} parent=1 // pred_fallthru
      _
    // Predicated region
    $region14: #{tpu_custom_call.1} parent=1 // pred_check
      _
    $region15: #{tpu_custom_call.1} parent=1 // pred_check_branch
      %40 = sbr.rel (0) target = $region17
    $region16: #{tpu_custom_call.1} parent=1 // pred_region
      %s42 = ssub.s32 256, 256
      %43 = vsyncadd [#allocation9], %s42
      %s44 = sshll.u32 [#allocation10], 4
      %s45 = int_to_ptr.vmem [resolvable:$true] %s44
      %50 = dma.hbm_to_vmem [thread:$0]  %s3, 256, %s45, [#allocation9], 64, 64, 4
    $region17: #{tpu_custom_call.1} parent=1 // pred_fallthru
      _
    // Predicated region
    $region18: #{tpu_custom_call.1} parent=1 // pred_check
      _
    $region19: #{tpu_custom_call.1} parent=1 // pred_check_branch
      %52 = sbr.rel (0) target = $region21
    $region20: #{tpu_custom_call.1} parent=1 // pred_region
      _
    $region21: #{tpu_custom_call.1} parent=1 // pred_fallthru
      _
    // Predicated region
    $region22: #{tpu_custom_call.1} parent=1 // pred_check
      _
    $region23: #{tpu_custom_call.1} parent=1 // pred_check_branch
      %54 = sbr.rel (0) target = $region25
    $region24: #{tpu_custom_call.1} parent=1 // pred_region
      %55 = dma.done [#allocation6], 512
    $region25: #{tpu_custom_call.1} parent=1 // pred_fallthru
      _
    // Predicated region
    $region26: #{tpu_custom_call.1} parent=1 // pred_check
      _
    $region27: #{tpu_custom_call.1} parent=1 // pred_check_branch
      %57 = sbr.rel (0) target = $region29
    $region28: #{tpu_custom_call.1} parent=1 // pred_region
      %58 = dma.done [#allocation9], 256
    $region29: #{tpu_custom_call.1} parent=1 // pred_fallthru
      _
    // Predicated region
    $region30: #{tpu_custom_call.1} parent=1 // pred_check
      _
    $region31: #{tpu_custom_call.1} parent=1 // pred_check_branch
      %60 = sbr.rel (0) target = $region33
    $region32: #{tpu_custom_call.1} parent=1 // pred_region
      %61 = dma.done [#allocation9], 256
    $region33: #{tpu_custom_call.1} parent=1 // pred_fallthru
      _
    %p63 = scmp.eq.s32.totalorder 0, 0
    // Predicated region
    $region34: #{tpu_custom_call.1} parent=1 // pred_check
      %p64 = pneg %p63
    $region35: #{tpu_custom_call.1} parent=1 // pred_check_branch
      %66 = sbr.rel (%p64) target = $region37
    $region36: #{tpu_custom_call.1} parent=1 // pred_region
      %vm67 = vcmask 7168
      %68 = vst.msk [vmem:[#allocation2] sm:$0xff] %vm67, -1e+30
      %69 = vst.msk [vmem:[#allocation3] sm:$0xff] %vm67, 0.0
      %vm70 = vcmask 261120
      %71 = vst.msk [vmem:[#allocation4] sm:$0xff] %vm70, 0.0
    $region37: #{tpu_custom_call.1} parent=1 // pred_fallthru
      _
    %v72 = vld [vmem:[#allocation5] sm:$0xf]
    %v73 = vld [vmem:[#allocation5 + $0x4] sm:$0xf]
    %v74 = vld [vmem:[#allocation5 + $0x8] sm:$0xf]
    %v75 = vld [vmem:[#allocation5 + $0xc] sm:$0xf]
    %v76 = vld [vmem:[#allocation5 + $0x10] sm:$0xf]
    %v77 = vld [vmem:[#allocation5 + $0x14] sm:$0xf]
    %v78 = vld [vmem:[#allocation5 + $0x18] sm:$0xf]
    %v79 = vld [vmem:[#allocation5 + $0x1c] sm:$0xf]
    %v80 = vld [vmem:[#allocation8] sm:$0xf]
    %v81 = vld [vmem:[#allocation8 + $0x4] sm:$0xf]
    %v82 = vld [vmem:[#allocation8 + $0x8] sm:$0xf]
    %v83 = vld [vmem:[#allocation8 + $0xc] sm:$0xf]
    %v92 = vunpack.c.l.b16 %v72
    %v93 = vunpack.c.l.b16 %v73
    %v94 = vunpack.c.l.b16 %v74
    %v95 = vunpack.c.l.b16 %v75
    %v96 = vunpack.c.l.b16 %v76
    %v97 = vunpack.c.l.b16 %v77
    %v98 = vunpack.c.l.b16 %v78
    %v99 = vunpack.c.l.b16 %v79
    %v100 = vpack.c.b16 %v93, %v92
    %v101 = vpack.c.b16 %v95, %v94
    %v102 = vpack.c.b16 %v97, %v96
    %v103 = vpack.c.b16 %v99, %v98
    %v108 = vunpack.c.l.b16 %v80
    %v109 = vunpack.c.l.b16 %v81
    %v110 = vunpack.c.l.b16 %v82
    %v111 = vunpack.c.l.b16 %v83
    %v112 = vpack.c.b16 %v109, %v108
    %v113 = vpack.c.b16 %v111, %v110
    %vm116 = vcmask 261120
    %v118 = vsel %vm116, %v100, 0
    %v121 = vsel %vm116, %v101, 0
    %v124 = vsel %vm116, %v102, 0
    %v127 = vsel %vm116, %v103, 0
    %129 = vmatprep.subr.bf16.mxu0 0
    %130 = vmatpush1.bf16.msra.mxu0 %v112
    %131 = vmatprep.subr.bf16.mxu0 0
    %132 = vmatpush1.bf16.msra.mxu0 %v113
    %133 = vmatprep.subr.bf16.mxu0 0
    %134 = vmatpush1.bf16.msra.mxu0 0
    %135 = vmatprep.subr.bf16.mxu0 0
    %136 = vmatpush1.bf16.msra.mxu0 0
    %137 = vmatprep.subr.bf16.mxu0 0
    %138 = vmatpush1.bf16.msra.mxu0 0
    %139 = vmatprep.subr.bf16.mxu0 0
    %140 = vmatpush1.bf16.msra.mxu0 0
    %141 = vmatprep.subr.bf16.mxu0 0
    %142 = vmatpush1.bf16.msra.mxu0 0
    %143 = vmatprep.subr.bf16.mxu0 0
    %144 = vmatpush1.bf16.msra.mxu0 0
    %145 = vmatprep.subr.bf16.mxu0 0
    %146 = vmatpush1.bf16.msra.mxu0 0
    %147 = vmatprep.subr.bf16.mxu0 0
    %148 = vmatpush1.bf16.msra.mxu0 0
    %149 = vmatprep.subr.bf16.mxu0 0
    %150 = vmatpush1.bf16.msra.mxu0 0
    %151 = vmatprep.subr.bf16.mxu0 0
    %152 = vmatpush1.bf16.msra.mxu0 0
    %153 = vmatprep.subr.bf16.mxu0 0
    %154 = vmatpush1.bf16.msra.mxu0 0
    %155 = vmatprep.subr.bf16.mxu0 0
    %156 = vmatpush1.bf16.msra.mxu0 0
    %157 = vmatprep.subr.bf16.mxu0 0
    %158 = vmatpush1.bf16.msra.mxu0 0
    %159 = vmatprep.subr.bf16.mxu0 0
    %160 = vmatpush1.bf16.msra.mxu0 0
    %161 = vmatprep.mubr.bf16.mxu0 0
    %162 = vmatmul.mubr.bf16.gmra.mrb[0].mxu0 %v118
    %v163 = vpop.f32.mrb[0].mxu0
    %v164 = vadd.f32 0.0, %v163
    %v165 = vpop.f32.mrb[0].mxu0
    %v166 = vpop.f32.mrb[0].mxu0
    %v167 = vadd.f32 0.0, %v166
    %v168 = vpop.f32.mrb[0].mxu0
    %169 = vmatprep.mubr.bf16.mxu0 0
    %170 = vmatmul.mubr.bf16.gmra.mrb[0].mxu0 %v121
    %v171 = vpop.f32.mrb[0].mxu0
    %v172 = vadd.f32 0.0, %v171
    %v173 = vpop.f32.mrb[0].mxu0
    %v174 = vpop.f32.mrb[0].mxu0
    %v175 = vadd.f32 0.0, %v174
    %v176 = vpop.f32.mrb[0].mxu0
    %177 = vmatprep.mubr.bf16.mxu0 0
    %178 = vmatmul.mubr.bf16.gmra.mrb[0].mxu0 %v124
    %v179 = vpop.f32.mrb[0].mxu0
    %v180 = vadd.f32 0.0, %v179
    %v181 = vpop.f32.mrb[0].mxu0
    %v182 = vpop.f32.mrb[0].mxu0
    %v183 = vadd.f32 0.0, %v182
    %v184 = vpop.f32.mrb[0].mxu0
    %185 = vmatprep.mubr.bf16.mxu0 0
    %186 = vmatmul.mubr.bf16.gmra.mrb[0].mxu0 %v127
    %v187 = vpop.f32.mrb[0].mxu0
    %v188 = vadd.f32 0.0, %v187
    %v189 = vpop.f32.mrb[0].mxu0
    %v190 = vpop.f32.mrb[0].mxu0
    %v191 = vadd.f32 0.0, %v190
    %v192 = vpop.f32.mrb[0].mxu0
    %193 = vdwg.mxu0
    %v194 = vtanh.pop %v164
    %v195 = vtanh.pop %v167
    %v196 = vtanh.pop %v172
    %v197 = vtanh.pop %v175
    %v198 = vtanh.pop %v180
    %v199 = vtanh.pop %v183
    %v200 = vtanh.pop %v188
    %v201 = vtanh.pop %v191
    %v202 = vld [vmem:[%s2] sm:$0x1]
    %v204 = vlaneseq
    %v205 = vshrl.u32 %v204, 7
    %v206 = vsub.s32 0, %v205
    %v207 = vrot.slane %v202, %v206
    %v209 = vmul.f32 %v194, %v207
    %v210 = vmul.f32 %v195, %v207
    %v211 = vmul.f32 %v196, %v207
    %v212 = vmul.f32 %v197, %v207
    %v213 = vmul.f32 %v198, %v207
    %v214 = vmul.f32 %v199, %v207
    %v215 = vmul.f32 %v200, %v207
    %v216 = vmul.f32 %v201, %v207
    %217 = vadd.xlane.f32.xlu0 %v209
    %v218 = vpop.xlane.xlu0 %217
    %219 = vadd.xlane.f32.xlu0 %v210
    %v220 = vpop.xlane.xlu0 %219
    %221 = vadd.xlane.f32.xlu0 %v211
    %v222 = vpop.xlane.xlu0 %221
    %223 = vadd.xlane.f32.xlu0 %v212
    %v224 = vpop.xlane.xlu0 %223
    %225 = vadd.xlane.f32.xlu0 %v213
    %v226 = vpop.xlane.xlu0 %225
    %227 = vadd.xlane.f32.xlu0 %v214
    %v228 = vpop.xlane.xlu0 %227
    %229 = vadd.xlane.f32.xlu0 %v215
    %v230 = vpop.xlane.xlu0 %229
    %231 = vadd.xlane.f32.xlu0 %v216
    %v232 = vpop.xlane.xlu0 %231
    %v233 = vld [vmem:[#allocation2] sm:$0xff]
    %v234 = vrot.slane %v218, 4
    %v235 = vmax.f32 %v218, %v234
    %v236 = vrot.slane %v235, 2
    %v237 = vmax.f32 %v235, %v236
    %v238 = vrot.slane %v237, 1
    %v239 = vmax.f32 %v237, %v238
    %v240 = vrot.slane %v220, 4
    %v241 = vmax.f32 %v220, %v240
    %v242 = vrot.slane %v241, 2
    %v243 = vmax.f32 %v241, %v242
    %v244 = vrot.slane %v243, 1
    %v245 = vmax.f32 %v243, %v244
    %v246 = vrot.slane %v222, 4
    %v247 = vmax.f32 %v222, %v246
    %v248 = vrot.slane %v247, 2
    %v249 = vmax.f32 %v247, %v248
    %v250 = vrot.slane %v249, 1
    %v251 = vmax.f32 %v249, %v250
    %v252 = vrot.slane %v224, 4
    %v253 = vmax.f32 %v224, %v252
    %v254 = vrot.slane %v253, 2
    %v255 = vmax.f32 %v253, %v254
    %v256 = vrot.slane %v255, 1
    %v257 = vmax.f32 %v255, %v256
    %v258 = vrot.slane %v226, 4
    %v259 = vmax.f32 %v226, %v258
    %v260 = vrot.slane %v259, 2
    %v261 = vmax.f32 %v259, %v260
    %v262 = vrot.slane %v261, 1
    %v263 = vmax.f32 %v261, %v262
    %v264 = vrot.slane %v228, 4
    %v265 = vmax.f32 %v228, %v264
    %v266 = vrot.slane %v265, 2
    %v267 = vmax.f32 %v265, %v266
    %v268 = vrot.slane %v267, 1
    %v269 = vmax.f32 %v267, %v268
    %v270 = vrot.slane %v230, 4
    %v271 = vmax.f32 %v230, %v270
    %v272 = vrot.slane %v271, 2
    %v273 = vmax.f32 %v271, %v272
    %v274 = vrot.slane %v273, 1
    %v275 = vmax.f32 %v273, %v274
    %v276 = vrot.slane %v232, 4
    %v277 = vmax.f32 %v232, %v276
    %v278 = vrot.slane %v277, 2
    %v279 = vmax.f32 %v277, %v278
    %v280 = vrot.slane %v279, 1
    %v281 = vmax.f32 %v279, %v280
    %vm290 = vcmask 1041409
    %v291 = vsel %vm290, %v245, %v239
    %vm292 = vcmask 1042434
    %v293 = vsel %vm292, %v251, %v291
    %vm294 = vcmask 1043459
    %v295 = vsel %vm294, %v257, %v293
    %vm296 = vcmask 1044484
    %v297 = vsel %vm296, %v263, %v295
    %vm298 = vcmask 1045509
    %v299 = vsel %vm298, %v269, %v297
    %vm300 = vcmask 1046534
    %v301 = vsel %vm300, %v275, %v299
    %vm302 = vcmask 1047559
    %v303 = vsel %vm302, %v281, %v301
    %v305 = vmax.f32 %v233, %v303
    %v306 = vsub.f32 %v233, %v305
    %v307 = vmul.f32 %v306, 1.442695
    %v308 = vpow.pop %v307
    %v310 = vcombine.high %v305, %v305
    %v312 = vunpack.c.l.s4 1966171168
    %v313 = vunpack.c.0.s8 %v312
    %v314 = vlaneseq
    %v315 = vshrl.u32 %v314, 7
    %v316 = vsub.s32 %v313, %v315
    %v317 = vrot.slane %v305, %v316
    %v319 = vunpack.c.l.s4 1966171168
    %v320 = vunpack.c.0.s8 %v319
    %v321 = vlaneseq
    %v322 = vshrl.u32 %v321, 7
    %v323 = vsub.s32 %v320, %v322
    %v324 = vrot.slane %v310, %v323
    %v325 = vcombine.high %v317, %v317
    %v326 = vcombine.high %v324, %v324
    %v328 = vunpack.c.l.s4 1966171168
    %v329 = vunpack.c.0.s8 %v328
    %v330 = vlaneseq
    %v331 = vshrl.u32 %v330, 7
    %v332 = vsub.s32 %v329, %v331
    %v333 = vrot.slane %v317, %v332
    %v335 = vunpack.c.l.s4 1966171168
    %v336 = vunpack.c.0.s8 %v335
    %v337 = vlaneseq
    %v338 = vshrl.u32 %v337, 7
    %v339 = vsub.s32 %v336, %v338
    %v340 = vrot.slane %v324, %v339
    %v342 = vunpack.c.l.s4 1966171168
    %v343 = vunpack.c.0.s8 %v342
    %v344 = vlaneseq
    %v345 = vshrl.u32 %v344, 7
    %v346 = vsub.s32 %v343, %v345
    %v347 = vrot.slane %v325, %v346
    %v349 = vunpack.c.l.s4 1966171168
    %v350 = vunpack.c.0.s8 %v349
    %v351 = vlaneseq
    %v352 = vshrl.u32 %v351, 7
    %v353 = vsub.s32 %v350, %v352
    %v354 = vrot.slane %v326, %v353
    %v355 = vcombine.high %v333, %v333
    %v356 = vcombine.high %v340, %v340
    %v357 = vcombine.high %v347, %v347
    %v358 = vcombine.high %v354, %v354
    %v359 = vlaneseq
    %v360 = vshrl.u32 %v359, 7
    %v361 = vsub.s32 0, %v360
    %v362 = vrot.slane %v333, %v361
    %v363 = vlaneseq
    %v364 = vshrl.u32 %v363, 7
    %v365 = vsub.s32 0, %v364
    %v366 = vrot.slane %v347, %v365
    %v367 = vlaneseq
    %v368 = vshrl.u32 %v367, 7
    %v369 = vsub.s32 0, %v368
    %v370 = vrot.slane %v355, %v369
    %v371 = vlaneseq
    %v372 = vshrl.u32 %v371, 7
    %v373 = vsub.s32 0, %v372
    %v374 = vrot.slane %v357, %v373
    %v375 = vlaneseq
    %v376 = vshrl.u32 %v375, 7
    %v377 = vsub.s32 0, %v376
    %v378 = vrot.slane %v340, %v377
    %v379 = vlaneseq
    %v380 = vshrl.u32 %v379, 7
    %v381 = vsub.s32 0, %v380
    %v382 = vrot.slane %v354, %v381
    %v383 = vlaneseq
    %v384 = vshrl.u32 %v383, 7
    %v385 = vsub.s32 0, %v384
    %v386 = vrot.slane %v356, %v385
    %v387 = vlaneseq
    %v388 = vshrl.u32 %v387, 7
    %v389 = vsub.s32 0, %v388
    %v390 = vrot.slane %v358, %v389
    %v399 = vsub.f32 %v218, %v362
    %v400 = vsub.f32 %v220, %v366
    %v401 = vsub.f32 %v222, %v370
    %v402 = vsub.f32 %v224, %v374
    %v403 = vsub.f32 %v226, %v378
    %v404 = vsub.f32 %v228, %v382
    %v405 = vsub.f32 %v230, %v386
    %v406 = vsub.f32 %v232, %v390
    %v407 = vmul.f32 %v399, 1.442695
    %v408 = vpow.pop %v407
    %v409 = vmul.f32 %v400, 1.442695
    %v410 = vpow.pop %v409
    %v411 = vmul.f32 %v401, 1.442695
    %v412 = vpow.pop %v411
    %v413 = vmul.f32 %v402, 1.442695
    %v414 = vpow.pop %v413
    %v415 = vmul.f32 %v403, 1.442695
    %v416 = vpow.pop %v415
    %v417 = vmul.f32 %v404, 1.442695
    %v418 = vpow.pop %v417
    %v419 = vmul.f32 %v405, 1.442695
    %v420 = vpow.pop %v419
    %v421 = vmul.f32 %v406, 1.442695
    %v422 = vpow.pop %v421
    %v423 = vunpack.c.l.bf16 %v72
    %v424 = vunpack.c.l.bf16 %v73
    %v425 = vunpack.c.l.bf16 %v74
    %v426 = vunpack.c.l.bf16 %v75
    %v427 = vunpack.c.l.bf16 %v76
    %v428 = vunpack.c.l.bf16 %v77
    %v429 = vunpack.c.l.bf16 %v78
    %v430 = vunpack.c.l.bf16 %v79
    %v431 = vld [vmem:[#allocation3] sm:$0xff]
    %v432 = vmul.f32 %v308, %v431
    %vm433 = vcmask 7168
    %v434 = vsel %vm433, %v408, 0.0
    %v435 = vrot.slane %v434, 4
    %v436 = vadd.f32 %v434, %v435
    %v437 = vrot.slane %v436, 2
    %v438 = vadd.f32 %v436, %v437
    %v439 = vrot.slane %v438, 1
    %v440 = vadd.f32 %v438, %v439
    %v441 = vsel %vm433, %v410, 0.0
    %v442 = vrot.slane %v441, 4
    %v443 = vadd.f32 %v441, %v442
    %v444 = vrot.slane %v443, 2
    %v445 = vadd.f32 %v443, %v444
    %v446 = vrot.slane %v445, 1
    %v447 = vadd.f32 %v445, %v446
    %v448 = vsel %vm433, %v412, 0.0
    %v449 = vrot.slane %v448, 4
    %v450 = vadd.f32 %v448, %v449
    %v451 = vrot.slane %v450, 2
    %v452 = vadd.f32 %v450, %v451
    %v453 = vrot.slane %v452, 1
    %v454 = vadd.f32 %v452, %v453
    %v455 = vsel %vm433, %v414, 0.0
    %v456 = vrot.slane %v455, 4
    %v457 = vadd.f32 %v455, %v456
    %v458 = vrot.slane %v457, 2
    %v459 = vadd.f32 %v457, %v458
    %v460 = vrot.slane %v459, 1
    %v461 = vadd.f32 %v459, %v460
    %v462 = vsel %vm433, %v416, 0.0
    %v463 = vrot.slane %v462, 4
    %v464 = vadd.f32 %v462, %v463
    %v465 = vrot.slane %v464, 2
    %v466 = vadd.f32 %v464, %v465
    %v467 = vrot.slane %v466, 1
    %v468 = vadd.f32 %v466, %v467
    %v469 = vsel %vm433, %v418, 0.0
    %v470 = vrot.slane %v469, 4
    %v471 = vadd.f32 %v469, %v470
    %v472 = vrot.slane %v471, 2
    %v473 = vadd.f32 %v471, %v472
    %v474 = vrot.slane %v473, 1
    %v475 = vadd.f32 %v473, %v474
    %v476 = vsel %vm433, %v420, 0.0
    %v477 = vrot.slane %v476, 4
    %v478 = vadd.f32 %v476, %v477
    %v479 = vrot.slane %v478, 2
    %v480 = vadd.f32 %v478, %v479
    %v481 = vrot.slane %v480, 1
    %v482 = vadd.f32 %v480, %v481
    %v483 = vsel %vm433, %v422, 0.0
    %v484 = vrot.slane %v483, 4
    %v485 = vadd.f32 %v483, %v484
    %v486 = vrot.slane %v485, 2
    %v487 = vadd.f32 %v485, %v486
    %v488 = vrot.slane %v487, 1
    %v489 = vadd.f32 %v487, %v488
    %v498 = vsel %vm290, %v447, %v440
    %v499 = vsel %vm292, %v454, %v498
    %v500 = vsel %vm294, %v461, %v499
    %v501 = vsel %vm296, %v468, %v500
    %v502 = vsel %vm298, %v475, %v501
    %v503 = vsel %vm300, %v482, %v502
    %v504 = vsel %vm302, %v489, %v503
    %v506 = vadd.f32 %v432, %v504
    %507 = vst.msk [vmem:[#allocation3] sm:$0xff] %vm433, %v506
    %v508 = vld [vmem:[#allocation4] sm:$0xff]
    %510 = vset.pattern.permute.xlu0 0
    %511 = vperm.xlu0 %510, %v308
    %v512 = vpop.permute.xlu0 %511
    %v514 = vmul.f32 %v512, %v508
    %516 = vset.pattern.permute.xlu0 0
    %517 = vperm.xlu0 %516, %v408
    %v518 = vpop.permute.xlu0 %517
    %521 = vset.pattern.permute.xlu0 0
    %522 = vperm.xlu0 %521, %v410
    %v523 = vpop.permute.xlu0 %522
    %526 = vset.pattern.permute.xlu0 0
    %527 = vperm.xlu0 %526, %v412
    %v528 = vpop.permute.xlu0 %527
    %531 = vset.pattern.permute.xlu0 0
    %532 = vperm.xlu0 %531, %v414
    %v533 = vpop.permute.xlu0 %532
    %536 = vset.pattern.permute.xlu0 0
    %537 = vperm.xlu0 %536, %v416
    %v538 = vpop.permute.xlu0 %537
    %541 = vset.pattern.permute.xlu0 0
    %542 = vperm.xlu0 %541, %v418
    %v543 = vpop.permute.xlu0 %542
    %546 = vset.pattern.permute.xlu0 0
    %547 = vperm.xlu0 %546, %v420
    %v548 = vpop.permute.xlu0 %547
    %551 = vset.pattern.permute.xlu0 0
    %552 = vperm.xlu0 %551, %v422
    %v553 = vpop.permute.xlu0 %552
    %v555 = vmul.f32 %v518, %v423
    %v556 = vmul.f32 %v523, %v424
    %v557 = vmul.f32 %v528, %v425
    %v558 = vmul.f32 %v533, %v426
    %v559 = vmul.f32 %v538, %v427
    %v560 = vmul.f32 %v543, %v428
    %v561 = vmul.f32 %v548, %v429
    %v562 = vmul.f32 %v553, %v430
    %v563 = vsel %vm116, %v555, 0.0
    %v564 = vrot.slane %v563, 4
    %v565 = vadd.f32 %v563, %v564
    %v566 = vrot.slane %v565, 2
    %v567 = vadd.f32 %v565, %v566
    %v568 = vrot.slane %v567, 1
    %v569 = vadd.f32 %v567, %v568
    %v570 = vsel %vm116, %v556, 0.0
    %v571 = vrot.slane %v570, 4
    %v572 = vadd.f32 %v570, %v571
    %v573 = vrot.slane %v572, 2
    %v574 = vadd.f32 %v572, %v573
    %v575 = vrot.slane %v574, 1
    %v576 = vadd.f32 %v574, %v575
    %v577 = vsel %vm116, %v557, 0.0
    %v578 = vrot.slane %v577, 4
    %v579 = vadd.f32 %v577, %v578
    %v580 = vrot.slane %v579, 2
    %v581 = vadd.f32 %v579, %v580
    %v582 = vrot.slane %v581, 1
    %v583 = vadd.f32 %v581, %v582
    %v584 = vsel %vm116, %v558, 0.0
    %v585 = vrot.slane %v584, 4
    %v586 = vadd.f32 %v584, %v585
    %v587 = vrot.slane %v586, 2
    %v588 = vadd.f32 %v586, %v587
    %v589 = vrot.slane %v588, 1
    %v590 = vadd.f32 %v588, %v589
    %v591 = vsel %vm116, %v559, 0.0
    %v592 = vrot.slane %v591, 4
    %v593 = vadd.f32 %v591, %v592
    %v594 = vrot.slane %v593, 2
    %v595 = vadd.f32 %v593, %v594
    %v596 = vrot.slane %v595, 1
    %v597 = vadd.f32 %v595, %v596
    %v598 = vsel %vm116, %v560, 0.0
    %v599 = vrot.slane %v598, 4
    %v600 = vadd.f32 %v598, %v599
    %v601 = vrot.slane %v600, 2
    %v602 = vadd.f32 %v600, %v601
    %v603 = vrot.slane %v602, 1
    %v604 = vadd.f32 %v602, %v603
    %v605 = vsel %vm116, %v561, 0.0
    %v606 = vrot.slane %v605, 4
    %v607 = vadd.f32 %v605, %v606
    %v608 = vrot.slane %v607, 2
    %v609 = vadd.f32 %v607, %v608
    %v610 = vrot.slane %v609, 1
    %v611 = vadd.f32 %v609, %v610
    %v612 = vsel %vm116, %v562, 0.0
    %v613 = vrot.slane %v612, 4
    %v614 = vadd.f32 %v612, %v613
    %v615 = vrot.slane %v614, 2
    %v616 = vadd.f32 %v614, %v615
    %v617 = vrot.slane %v616, 1
    %v618 = vadd.f32 %v616, %v617
    %v627 = vsel %vm290, %v576, %v569
    %v628 = vsel %vm292, %v583, %v627
    %v629 = vsel %vm294, %v590, %v628
    %v630 = vsel %vm296, %v597, %v629
    %v631 = vsel %vm298, %v604, %v630
    %v632 = vsel %vm300, %v611, %v631
    %v633 = vsel %vm302, %v618, %v632
    %v635 = vadd.f32 %v514, %v633
    %636 = vst.msk [vmem:[#allocation4] sm:$0xff] %vm116, %v635
    %637 = vst.msk [vmem:[#allocation2] sm:$0xff] %vm433, %v305
    // Predicated region
    $region38: #{tpu_custom_call.1} parent=1 // pred_check
      %p638 = pneg %p63
    $region39: #{tpu_custom_call.1} parent=1 // pred_check_branch
      %640 = sbr.rel (%p638) target = $region41
    $region40: #{tpu_custom_call.1} parent=1 // pred_region
      %v641 = vld [vmem:[#allocation4] sm:$0xff]
      %v642 = vld [vmem:[#allocation3] sm:$0xff]
      %v643 = vrcp.pop %v642
      %645 = vset.pattern.permute.xlu0 0
      %646 = vperm.xlu0 %645, %v643
      %v647 = vpop.permute.xlu0 %646
      %v649 = vmul.f32 %v641, %v647
      %v650 = vpack.c.bf16 %v649, %v649
      %v651 = vld [vmem:[#allocation10] sm:$0xf]
      %v652 = vld [vmem:[#allocation10 + $0x4] sm:$0xf]
      %v653 = vld [vmem:[#allocation10 + $0x8] sm:$0xf]
      %v654 = vld [vmem:[#allocation10 + $0xc] sm:$0xf]
      %v655 = vld [vmem:[%s4] sm:$0x1]
      %v657 = vlaneseq
      %v658 = vshrl.u32 %v657, 7
      %v659 = vsub.s32 0, %v658
      %v660 = vrot.slane %v655, %v659
      %v666 = vunpack.c.l.b16 %v651
      %v667 = vunpack.c.l.b16 %v652
      %v668 = vunpack.c.l.b16 %v653
      %v669 = vunpack.c.l.b16 %v654
      %v670 = vpack.c.b16 %v667, %v666
      %v671 = vpack.c.b16 %v669, %v668
      %v675 = vsel %vm116, %v650, 0
      %677 = vmatprep.subr.bf16.mxu0 0
      %678 = vmatpush1.bf16.msra.mxu0 %v670
      %679 = vmatprep.subr.bf16.mxu0 0
      %680 = vmatpush1.bf16.msra.mxu0 %v671
      %681 = vmatprep.subr.bf16.mxu0 0
      %682 = vmatpush1.bf16.msra.mxu0 0
      %683 = vmatprep.subr.bf16.mxu0 0
      %684 = vmatpush1.bf16.msra.mxu0 0
      %685 = vmatprep.subr.bf16.mxu0 0
      %686 = vmatpush1.bf16.msra.mxu0 0
      %687 = vmatprep.subr.bf16.mxu0 0
      %688 = vmatpush1.bf16.msra.mxu0 0
      %689 = vmatprep.subr.bf16.mxu0 0
      %690 = vmatpush1.bf16.msra.mxu0 0
      %691 = vmatprep.subr.bf16.mxu0 0
      %692 = vmatpush1.bf16.msra.mxu0 0
      %693 = vmatprep.subr.bf16.mxu0 0
      %694 = vmatpush1.bf16.msra.mxu0 0
      %695 = vmatprep.subr.bf16.mxu0 0
      %696 = vmatpush1.bf16.msra.mxu0 0
      %697 = vmatprep.subr.bf16.mxu0 0
      %698 = vmatpush1.bf16.msra.mxu0 0
      %699 = vmatprep.subr.bf16.mxu0 0
      %700 = vmatpush1.bf16.msra.mxu0 0
      %701 = vmatprep.subr.bf16.mxu0 0
      %702 = vmatpush1.bf16.msra.mxu0 0
      %703 = vmatprep.subr.bf16.mxu0 0
      %704 = vmatpush1.bf16.msra.mxu0 0
      %705 = vmatprep.subr.bf16.mxu0 0
      %706 = vmatpush1.bf16.msra.mxu0 0
      %707 = vmatprep.subr.bf16.mxu0 0
      %708 = vmatpush1.bf16.msra.mxu0 0
      %709 = vmatprep.mubr.bf16.mxu0 0
      %710 = vmatmul.mubr.bf16.gmra.mrb[0].mxu0 %v675
      %v711 = vpop.f32.mrb[0].mxu0
      %v712 = vadd.f32 %v660, %v711
      %v713 = vpop.f32.mrb[0].mxu0
      %v714 = vpop.f32.mrb[0].mxu0
      %v715 = vpop.f32.mrb[0].mxu0
      %716 = vdwg.mxu0
      %717 = vst [vmem:[#allocation11] sm:$0xff] %v712
    $region41: #{tpu_custom_call.1} parent=1 // pred_fallthru
      _
    // Predicated region
    $region42: #{tpu_custom_call.1} parent=1 // pred_check
      _
    $region43: #{tpu_custom_call.1} parent=1 // pred_check_branch
      %719 = sbr.rel (0) target = $region45
    $region44: #{tpu_custom_call.1} parent=1 // pred_region
      %s721 = ssub.s32 128, 128
      %722 = vsyncadd [#allocation7], %s721
      %s724 = sshll.u32 [#allocation11], 4
      %s725 = int_to_ptr.vmem [resolvable:$true] %s724
      %727 = dma.vmem_to_hbm [thread:$0]  %s725, 128, %s5, [#allocation7]
    $region45: #{tpu_custom_call.1} parent=1 // pred_fallthru
      _
    // Predicated region
    $region46: #{tpu_custom_call.1} parent=1 // pred_check
      _
    $region47: #{tpu_custom_call.1} parent=1 // pred_check_branch
      %729 = sbr.rel (0) target = $region49
    $region48: #{tpu_custom_call.1} parent=1 // pred_region
      %730 = dma.done [#allocation7], 128
    $region49: #{tpu_custom_call.1} parent=1 // pred_fallthru
      _
    %731 = vsyncpa [#allocation6], 1
    %732 = vsyncpa [#allocation9], 1
    %733 = vsyncpa [#allocation7], 1

</llo_original>
